<compile_context>
chip_gen: v5e
topology: v5e:2x2
jax: 0.10.0
libtpu: 0.0.40
codegen_flags: <defaults>
</compile_context>

<pallas_src>
import functools

import jax
import jax.numpy as jnp
from jax import lax
from jax.experimental import pallas as pl
from jax.experimental.pallas import tpu as pltpu

IN_FEATURES = 1024              # timm vit_large_patch16_384 head.in_features
HIDDEN = IN_FEATURES // 5       # 204
HIDDEN_PAD = 256                # lane-dense padding of the hidden dim
N_CLASSES = 20
OUT_PAD = 128                   # lane-dense padding of the output dim
DROP_P = 0.5
_KEEP_SCALE = 1.0 / (1.0 - DROP_P)
_DROP_THRESHOLD = min(int(DROP_P * (2 ** 32)), 2 ** 32 - 1)  # bits < threshold -> drop


def _round_up(x, m):
    return ((x + m - 1) // m) * m


def _hash_u32(x):
    # splitmix32-style finalizer: decorrelates (row, col, seed) into uniform 32-bit values.
    x = x ^ (x >> jnp.uint32(16))
    x = x * jnp.uint32(0x7FEB352D)
    x = x ^ (x >> jnp.uint32(15))
    x = x * jnp.uint32(0x846CA68B)
    x = x ^ (x >> jnp.uint32(16))
    return x


def head_kernel(seed_ref, x_ref, w1_ref, b1_ref, w2_ref, b2_ref, o_ref,
                *, tile_b, training):
    # ---- model.head: Linear(1024 -> 204), padded to 256; bf16 operands, f32 accumulate ----
    h = jnp.dot(x_ref[...], w1_ref[...], preferred_element_type=jnp.float32)
    h = h + b1_ref[...]

    # ---- ReLU ----
    h = jnp.maximum(h, 0.0)

    # ---- Dropout(p=0.5), train-mode semantics (statistically equivalent to torch RNG) ----
    if training and DROP_P > 0.0:
        row0 = jnp.uint32(tile_b) * pl.program_id(0).astype(jnp.uint32)
        row = lax.broadcasted_iota(jnp.uint32, h.shape, 0) + row0      # global row id
        col = lax.broadcasted_iota(jnp.uint32, h.shape, 1)
        seed = seed_ref[0].astype(jnp.uint32)
        bits = _hash_u32((row * jnp.uint32(0x9E3779B1))
                         ^ (col * jnp.uint32(0x85EBCA77))
                         ^ seed)
        keep = bits >= jnp.uint32(_DROP_THRESHOLD)                     # P(keep) = 1 - DROP_P
        h = jnp.where(keep, h * jnp.float32(_KEEP_SCALE), jnp.float32(0.0))

    # ---- fc: Linear(204 -> 20), padded to (256 -> 128) ----
    out = jnp.dot(h.astype(jnp.bfloat16), w2_ref[...],
                  preferred_element_type=jnp.float32)
    o_ref[...] = out + b2_ref[...]


def prepare_params(w1, b1, w2, b2):
    """Pad/cast torch-layout params ([in, out] weights) for the kernel. Zero padding
    keeps the math identical; padded outputs are sliced off in net_head."""
    w1p = jnp.zeros((IN_FEATURES, HIDDEN_PAD), jnp.bfloat16)
    w1p = w1p.at[:, :HIDDEN].set(w1.astype(jnp.bfloat16))
    b1p = jnp.zeros((1, HIDDEN_PAD), jnp.float32).at[:, :HIDDEN].set(b1.reshape(1, -1))
    w2p = jnp.zeros((HIDDEN_PAD, OUT_PAD), jnp.bfloat16)
    w2p = w2p.at[:HIDDEN, :N_CLASSES].set(w2.astype(jnp.bfloat16))
    b2p = jnp.zeros((1, OUT_PAD), jnp.float32).at[:, :N_CLASSES].set(b2.reshape(1, -1))
    return w1p, b1p, w2p, b2p


def net_head(features, w1p, b1p, w2p, b2p, seed, *, training=True, tile_b_max=256):
    """features: [B, IN_FEATURES]; params from prepare_params(); seed: int32[1].
    Returns logits [B, N_CLASSES] float32."""
    B = features.shape[0]
    tile_b = min(tile_b_max, _round_up(B, 16))       # multiple of 16 for bf16 sublane packing
    Bp = _round_up(B, tile_b)

    x = features.astype(jnp.bfloat16)
    if Bp != B:
        x = jnp.pad(x, ((0, Bp - B), (0, 0)))

    kernel = functools.partial(head_kernel, tile_b=tile_b, training=training)

    out = pl.pallas_call(
        kernel,
        out_shape=jax.ShapeDtypeStruct((Bp, OUT_PAD), jnp.float32),
        grid_spec=pltpu.PrefetchScalarGridSpec(
            num_scalar_prefetch=1,
            grid=(Bp // tile_b,),
            in_specs=[
                pl.BlockSpec((tile_b, IN_FEATURES), lambda i, s_ref: (i, 0)),      # x tile
                pl.BlockSpec((IN_FEATURES, HIDDEN_PAD), lambda i, s_ref: (0, 0)),  # w1 resident
                pl.BlockSpec((1, HIDDEN_PAD), lambda i, s_ref: (0, 0)),            # b1 resident
                pl.BlockSpec((HIDDEN_PAD, OUT_PAD), lambda i, s_ref: (0, 0)),      # w2 resident
                pl.BlockSpec((1, OUT_PAD), lambda i, s_ref: (0, 0)),               # b2 resident
            ],
            out_specs=pl.BlockSpec((tile_b, OUT_PAD), lambda i, s_ref: (i, 0)),
        ),
        compiler_params=pltpu.CompilerParams(
            dimension_semantics=("parallel",)),
    )(seed, x, w1p, b1p, w2p, b2p)

    return out[:B, :N_CLASSES]


if __name__ == "__main__":
    key = jax.random.PRNGKey(0)
    k_x, k_w1, k_b1, k_w2, k_b2 = jax.random.split(key, 5)

    B = 8  # small batch

    # Backbone features (stand-in for self.model(x) output of shape [B, 1024]).
    x_feat = jax.random.normal(k_x, (B, IN_FEATURES), dtype=jnp.float32)

    # torch.nn.Linear-style uniform fan-in init; weights stored [in, out] so the kernel
    # computes x @ W + b (== torch x @ W^T + b).
    bound1 = 1.0 / (IN_FEATURES ** 0.5)
    w1 = jax.random.uniform(k_w1, (IN_FEATURES, HIDDEN), jnp.float32, -bound1, bound1)
    b1 = jax.random.uniform(k_b1, (HIDDEN,), jnp.float32, -bound1, bound1)

    bound2 = 1.0 / (HIDDEN ** 0.5)
    w2 = jax.random.uniform(k_w2, (HIDDEN, N_CLASSES), jnp.float32, -bound2, bound2)
    b2 = jax.random.uniform(k_b2, (N_CLASSES,), jnp.float32, -bound2, bound2)

    w1p, b1p, w2p, b2p = prepare_params(w1, b1, w2, b2)
    seed = jnp.array([0], dtype=jnp.int32)

    # Train-mode forward (dropout active), matching Net.forward semantics.
    logits = net_head(x_feat, w1p, b1p, w2p, b2p, seed, training=True)
    jax.block_until_ready(logits)
    assert logits.shape == (B, N_CLASSES) and logits.dtype == jnp.float32

    # Eval-mode sanity check (dropout = identity) against a pure-JAX f32 reference.
    logits_eval = net_head(x_feat, w1p, b1p, w2p, b2p, seed, training=False)
    ref = jnp.maximum(x_feat @ w1 + b1, 0.0) @ w2 + b2
    assert jnp.allclose(logits_eval, ref, atol=1e-1, rtol=1e-1), "eval-mode mismatch"

    print("KERNEL_OK")
</pallas_src>

<mosaic_0001>
module attributes {stable_mosaic.version = 11 : i64} {
  func.func @head_kernel(%arg0: i32, %arg1: memref<1xi32, #tpu.memory_space<smem>>, %arg2: memref<16x1024xbf16, #tpu.memory_space<vmem>>, %arg3: memref<1024x256xbf16, #tpu.memory_space<vmem>>, %arg4: memref<1x256xf32, #tpu.memory_space<vmem>>, %arg5: memref<256x128xbf16, #tpu.memory_space<vmem>>, %arg6: memref<1x128xf32, #tpu.memory_space<vmem>>, %arg7: memref<16x128xf32, #tpu.memory_space<vmem>>) attributes {dimension_semantics = [#tpu.dimension_semantics<parallel>], iteration_bounds = array<i64: 1>, scalar_prefetch = 1 : i64, scratch_operands = 0 : i64, tpu.core_type = #tpu.core_type<tc>, window_params = [{transform_indices = @transform_0, window_bounds = array<i64: 16, 1024>}, {pipeline_mode = #tpu.pipeline_mode<synchronous>, transform_indices = @transform_1, window_bounds = array<i64: 1024, 256>}, {pipeline_mode = #tpu.pipeline_mode<synchronous>, transform_indices = @transform_2, window_bounds = array<i64: 1, 256>}, {pipeline_mode = #tpu.pipeline_mode<synchronous>, transform_indices = @transform_3, window_bounds = array<i64: 256, 128>}, {pipeline_mode = #tpu.pipeline_mode<synchronous>, transform_indices = @transform_4, window_bounds = array<i64: 1, 128>}, {transform_indices = @transform_5, window_bounds = array<i64: 16, 128>}]} {
    %c0 = arith.constant 0 : index
    %c0_0 = arith.constant 0 : index
    %0 = vector.load %arg2[%c0, %c0_0] : memref<16x1024xbf16, #tpu.memory_space<vmem>>, vector<16x1024xbf16>
    %c0_1 = arith.constant 0 : index
    %c0_2 = arith.constant 0 : index
    %1 = vector.load %arg3[%c0_1, %c0_2] : memref<1024x256xbf16, #tpu.memory_space<vmem>>, vector<1024x256xbf16>
    %cst = arith.constant dense<0.000000e+00> : vector<16x256xf32>
    %2 = tpu.matmul %0, %1, %cst {dimension_numbers = #tpu.dot_dimension_numbers<[1], [0], [0], [1], [0, 0, 1, 1], [], []>} : vector<16x1024xbf16>, vector<1024x256xbf16>, vector<16x256xf32> -> vector<16x256xf32>
    %c0_3 = arith.constant 0 : index
    %c0_4 = arith.constant 0 : index
    %3 = vector.load %arg4[%c0_3, %c0_4] : memref<1x256xf32, #tpu.memory_space<vmem>>, vector<1x256xf32>
    %4 = vector.broadcast %3 : vector<1x256xf32> to vector<16x256xf32>
    %5 = arith.addf %2, %4 : vector<16x256xf32>
    %cst_5 = arith.constant 0.000000e+00 : f32
    %6 = vector.broadcast %cst_5 : f32 to vector<16x256xf32>
    %7 = arith.maximumf %5, %6 : vector<16x256xf32>
    %c16_i32 = arith.constant 16 : i32
    %8 = arith.muli %c16_i32, %arg0 : i32
    %9 = tpu.iota {dimensions = array<i32: 0>} : vector<16x256xi32>
    %10 = vector.broadcast %8 : i32 to vector<16x256xi32>
    %11 = arith.addi %9, %10 : vector<16x256xi32>
    %12 = tpu.iota {dimensions = array<i32: 1>} : vector<16x256xi32>
    %c0_6 = arith.constant 0 : index
    %13 = memref.load %arg1[%c0_6] : memref<1xi32, #tpu.memory_space<smem>>
    %c-1640531535_i32 = arith.constant -1640531535 : i32
    %14 = vector.broadcast %c-1640531535_i32 : i32 to vector<16x256xi32>
    %15 = arith.muli %11, %14 : vector<16x256xi32>
    %c-2048144777_i32 = arith.constant -2048144777 : i32
    %16 = vector.broadcast %c-2048144777_i32 : i32 to vector<16x256xi32>
    %17 = arith.muli %12, %16 : vector<16x256xi32>
    %18 = arith.xori %15, %17 : vector<16x256xi32>
    %19 = vector.broadcast %13 : i32 to vector<16x256xi32>
    %20 = arith.xori %18, %19 : vector<16x256xi32>
    %c16_i32_7 = arith.constant 16 : i32
    %21 = vector.broadcast %c16_i32_7 : i32 to vector<16x256xi32>
    %22 = arith.shrui %20, %21 : vector<16x256xi32>
    %23 = arith.xori %20, %22 : vector<16x256xi32>
    %c2146121005_i32 = arith.constant 2146121005 : i32
    %24 = vector.broadcast %c2146121005_i32 : i32 to vector<16x256xi32>
    %25 = arith.muli %23, %24 : vector<16x256xi32>
    %c15_i32 = arith.constant 15 : i32
    %26 = vector.broadcast %c15_i32 : i32 to vector<16x256xi32>
    %27 = arith.shrui %25, %26 : vector<16x256xi32>
    %28 = arith.xori %25, %27 : vector<16x256xi32>
    %c-2073254261_i32 = arith.constant -2073254261 : i32
    %29 = vector.broadcast %c-2073254261_i32 : i32 to vector<16x256xi32>
    %30 = arith.muli %28, %29 : vector<16x256xi32>
    %c16_i32_8 = arith.constant 16 : i32
    %31 = vector.broadcast %c16_i32_8 : i32 to vector<16x256xi32>
    %32 = arith.shrui %30, %31 : vector<16x256xi32>
    %33 = arith.xori %30, %32 : vector<16x256xi32>
    %c-2147483648_i32 = arith.constant -2147483648 : i32
    %34 = vector.broadcast %c-2147483648_i32 : i32 to vector<16x256xi32>
    %35 = arith.cmpi uge, %33, %34 : vector<16x256xi32>
    %cst_9 = arith.constant 2.000000e+00 : f32
    %36 = vector.broadcast %cst_9 : f32 to vector<16x256xf32>
    %37 = arith.mulf %7, %36 : vector<16x256xf32>
    %cst_10 = arith.constant 0.000000e+00 : f32
    %38 = vector.broadcast %cst_10 : f32 to vector<16x256xf32>
    %39 = arith.select %35, %37, %38 : vector<16x256xi1>, vector<16x256xf32>
    %40 = arith.truncf %39 : vector<16x256xf32> to vector<16x256xbf16>
    %c0_11 = arith.constant 0 : index
    %c0_12 = arith.constant 0 : index
    %41 = vector.load %arg5[%c0_11, %c0_12] : memref<256x128xbf16, #tpu.memory_space<vmem>>, vector<256x128xbf16>
    %cst_13 = arith.constant dense<0.000000e+00> : vector<16x128xf32>
    %42 = tpu.matmul %40, %41, %cst_13 {dimension_numbers = #tpu.dot_dimension_numbers<[1], [0], [0], [1], [0, 0, 1, 1], [], []>} : vector<16x256xbf16>, vector<256x128xbf16>, vector<16x128xf32> -> vector<16x128xf32>
    %c0_14 = arith.constant 0 : index
    %c0_15 = arith.constant 0 : index
    %43 = vector.load %arg6[%c0_14, %c0_15] : memref<1x128xf32, #tpu.memory_space<vmem>>, vector<1x128xf32>
    %44 = vector.broadcast %43 : vector<1x128xf32> to vector<16x128xf32>
    %45 = arith.addf %42, %44 : vector<16x128xf32>
    %c0_16 = arith.constant 0 : index
    %c0_17 = arith.constant 0 : index
    %46 = vector.load %arg7[%c0_16, %c0_17] : memref<16x128xf32, #tpu.memory_space<vmem>>, vector<16x128xf32>
    tpu.vector_store %arg7[%c0_16, %c0_17], %45 {strides = array<i32>} : memref<16x128xf32, #tpu.memory_space<vmem>>, vector<16x128xf32>,
    return
  }
  func.func @transform_0(%arg0: i32, %arg1: memref<1xi32, #tpu.memory_space<smem>>) -> (i32, i32) {
    %c0_i32 = arith.constant 0 : i32
    %c0_i32_0 = arith.constant 0 : i32
    return %arg0, %c0_i32 : i32, i32
  }
  func.func @transform_1(%arg0: i32, %arg1: memref<1xi32, #tpu.memory_space<smem>>) -> (i32, i32) {
    %c0_i32 = arith.constant 0 : i32
    %c0_i32_0 = arith.constant 0 : i32
    %c0_i32_1 = arith.constant 0 : i32
    return %c0_i32, %c0_i32_0 : i32, i32
  }
  func.func @transform_2(%arg0: i32, %arg1: memref<1xi32, #tpu.memory_space<smem>>) -> (i32, i32) {
    %c0_i32 = arith.constant 0 : i32
    %c0_i32_0 = arith.constant 0 : i32
    %c0_i32_1 = arith.constant 0 : i32
    return %c0_i32, %c0_i32_0 : i32, i32
  }
  func.func @transform_3(%arg0: i32, %arg1: memref<1xi32, #tpu.memory_space<smem>>) -> (i32, i32) {
    %c0_i32 = arith.constant 0 : i32
    %c0_i32_0 = arith.constant 0 : i32
    %c0_i32_1 = arith.constant 0 : i32
    return %c0_i32, %c0_i32_0 : i32, i32
  }
  func.func @transform_4(%arg0: i32, %arg1: memref<1xi32, #tpu.memory_space<smem>>) -> (i32, i32) {
    %c0_i32 = arith.constant 0 : i32
    %c0_i32_0 = arith.constant 0 : i32
    %c0_i32_1 = arith.constant 0 : i32
    return %c0_i32, %c0_i32_0 : i32, i32
  }
  func.func @transform_5(%arg0: i32, %arg1: memref<1xi32, #tpu.memory_space<smem>>) -> (i32, i32) {
    %c0_i32 = arith.constant 0 : i32
    %c0_i32_0 = arith.constant 0 : i32
    return %arg0, %c0_i32 : i32, i32
  }
}

</mosaic_0001>

<llo_original>
// kernel: tpu_custom_call.1
$region0: #{tpu_custom_call.1}
  #allocation0 [shape = 'u32[]', space=smem, size = 0x4, offset = 0x4, fixed_abs, tag = 'smem constant byte address 0x4 - core index']
  #allocation1 [shape = 'u32[72,128]{1,0:T(1,128)}', space=vmem, size = 0x9000, scoped, tag = 'internal scratch']
  #allocation2 [shape = 's32[1]{0}', space=sflag, size = 0x4, scoped, tag = 'scoped memory for tpu_custom_call.1']
  #allocation3 [shape = 's32[1]{0:T(128)S(6)}', space=smem, size = 0x200, scoped, tag = 'prefetched SMEM operand 0']
  %s0 = inlined_call_operand.<no memory space> [shape: s32[1], index: 0, kind: input, shape index: {}]
  %s1 = inlined_call_operand.hbm [shape: bf16[16,1024], index: 1, kind: input, shape index: {}]
  %s2 = inlined_call_operand.hbm [shape: bf16[1024,256], index: 2, kind: input, shape index: {}]
  %s3 = inlined_call_operand.vmem [shape: f32[1,256], index: 3, kind: input, shape index: {}]
  %s4 = inlined_call_operand.hbm [shape: bf16[256,128], index: 4, kind: input, shape index: {}]
  %s5 = inlined_call_operand.vmem [shape: f32[1,128], index: 5, kind: input, shape index: {}]
  %s6 = inlined_call_operand.hbm [shape: f32[16,128], index: 6, kind: output, shape index: {}]
  %s7 = sld [smem:[#allocation0]]
  $region42: #{tpu_custom_call.1} parent=0
    _
  %s9 = ssub.s32 1, %s7
  %s10 = scalar_select 0, %s9, %s7
  %11 = sst [smem:[#allocation3]] %s0
  $region1: #{tpu_custom_call.1} parent=0
    #allocation4 [shape = 'u8[32768]{0}', space=vmem, size = 0x8000, scoped, tag = 'input window, operand 1, single buffered']
    #allocation5 [shape = 's32[1]{0}', space=sflag, size = 0x4, scoped, tag = 'scoped memory for tpu_custom_call.1']
    #allocation6 [shape = 's32[1]{0}', space=sflag, size = 0x4, scoped, tag = 'scoped memory for tpu_custom_call.1']
    #allocation7 [shape = 'u8[524288]{0}', space=vmem, size = 0x80000, scoped, tag = 'input window, operand 2, single buffered']
    #allocation8 [shape = 's32[1]{0}', space=sflag, size = 0x4, scoped, tag = 'scoped memory for tpu_custom_call.1']
    #allocation9 [shape = 'u8[65536]{0}', space=vmem, size = 0x10000, scoped, tag = 'input window, operand 4, single buffered']
    #allocation10 [shape = 'u8[8192]{0}', space=vmem, size = 0x2000, scoped, tag = 'output window, operand 0, single buffered']
    %12 = vsyncpa [#allocation5], 0
    %13 = vsyncpa [#allocation8], 0
    %14 = vsyncpa [#allocation6], 0
    // Predicated region
    $region2: #{tpu_custom_call.1} parent=1 // pred_check
      _
    $region3: #{tpu_custom_call.1} parent=1 // pred_check_branch
      %16 = sbr.rel (0) target = $region5
    $region4: #{tpu_custom_call.1} parent=1 // pred_region
      %18 = vsyncadd [#allocation5], 0
      %s19 = sshll.u32 %s1, 4
      %s20 = int_to_ptr.hbm [resolvable:$true] %s19
      %s21 = sshll.u32 [#allocation4], 4
      %s22 = int_to_ptr.vmem [resolvable:$true] %s21
      %27 = dma.hbm_to_vmem [thread:$0]  %s20, 1024, %s22, [#allocation5], 512, 512, 32
    $region5: #{tpu_custom_call.1} parent=1 // pred_fallthru
      _
    // Predicated region
    $region6: #{tpu_custom_call.1} parent=1 // pred_check
      _
    $region7: #{tpu_custom_call.1} parent=1 // pred_check_branch
      %29 = sbr.rel (0) target = $region9
    $region8: #{tpu_custom_call.1} parent=1 // pred_region
      %31 = vsyncadd [#allocation8], 0
      %s32 = sshll.u32 %s2, 4
      %s33 = int_to_ptr.hbm [resolvable:$true] %s32
      %s34 = sshll.u32 [#allocation7], 4
      %s35 = int_to_ptr.vmem [resolvable:$true] %s34
      %40 = dma.hbm_to_vmem [thread:$0]  %s33, 16384, %s35, [#allocation8], 128, 128, 8
    $region9: #{tpu_custom_call.1} parent=1 // pred_fallthru
      _
    // Predicated region
    $region10: #{tpu_custom_call.1} parent=1 // pred_check
      _
    $region11: #{tpu_custom_call.1} parent=1 // pred_check_branch
      %42 = sbr.rel (0) target = $region13
    $region12: #{tpu_custom_call.1} parent=1 // pred_region
      _
    $region13: #{tpu_custom_call.1} parent=1 // pred_fallthru
      _
    // Predicated region
    $region14: #{tpu_custom_call.1} parent=1 // pred_check
      _
    $region15: #{tpu_custom_call.1} parent=1 // pred_check_branch
      %44 = sbr.rel (0) target = $region17
    $region16: #{tpu_custom_call.1} parent=1 // pred_region
      %46 = vsyncadd [#allocation8], 0
      %s47 = sshll.u32 %s4, 4
      %s48 = int_to_ptr.hbm [resolvable:$true] %s47
      %s49 = sshll.u32 [#allocation9], 4
      %s50 = int_to_ptr.vmem [resolvable:$true] %s49
      %55 = dma.hbm_to_vmem [thread:$0]  %s48, 2048, %s50, [#allocation8], 64, 64, 4
    $region17: #{tpu_custom_call.1} parent=1 // pred_fallthru
      _
    // Predicated region
    $region18: #{tpu_custom_call.1} parent=1 // pred_check
      _
    $region19: #{tpu_custom_call.1} parent=1 // pred_check_branch
      %57 = sbr.rel (0) target = $region21
    $region20: #{tpu_custom_call.1} parent=1 // pred_region
      _
    $region21: #{tpu_custom_call.1} parent=1 // pred_fallthru
      _
    // Predicated region
    $region22: #{tpu_custom_call.1} parent=1 // pred_check
      _
    $region23: #{tpu_custom_call.1} parent=1 // pred_check_branch
      %59 = sbr.rel (0) target = $region25
    $region24: #{tpu_custom_call.1} parent=1 // pred_region
      %61 = dma.done [#allocation5], 1024
    $region25: #{tpu_custom_call.1} parent=1 // pred_fallthru
      _
    // Predicated region
    $region26: #{tpu_custom_call.1} parent=1 // pred_check
      _
    $region27: #{tpu_custom_call.1} parent=1 // pred_check_branch
      %63 = sbr.rel (0) target = $region29
    $region28: #{tpu_custom_call.1} parent=1 // pred_region
      %65 = dma.done [#allocation8], 16384
    $region29: #{tpu_custom_call.1} parent=1 // pred_fallthru
      _
    // Predicated region
    $region30: #{tpu_custom_call.1} parent=1 // pred_check
      _
    $region31: #{tpu_custom_call.1} parent=1 // pred_check_branch
      %67 = sbr.rel (0) target = $region33
    $region32: #{tpu_custom_call.1} parent=1 // pred_region
      %69 = dma.done [#allocation8], 2048
    $region33: #{tpu_custom_call.1} parent=1 // pred_fallthru
      _
    %v70 = vld [vmem:[#allocation4] sm:$0xff]
    %v71 = vld [vmem:[#allocation4 + $0x8] sm:$0xff]
    %v72 = vld [vmem:[#allocation4 + $0x10] sm:$0xff]
    %v73 = vld [vmem:[#allocation4 + $0x18] sm:$0xff]
    %v74 = vld [vmem:[#allocation4 + $0x20] sm:$0xff]
    %v75 = vld [vmem:[#allocation4 + $0x28] sm:$0xff]
    %v76 = vld [vmem:[#allocation4 + $0x30] sm:$0xff]
    %v77 = vld [vmem:[#allocation4 + $0x38] sm:$0xff]
    %v78 = vld [vmem:[#allocation7] sm:$0xff]
    %v79 = vld [vmem:[#allocation7 + $0x8] sm:$0xff]
    %v80 = vld [vmem:[#allocation7 + $0x10] sm:$0xff]
    %v81 = vld [vmem:[#allocation7 + $0x18] sm:$0xff]
    %v82 = vld [vmem:[#allocation7 + $0x20] sm:$0xff]
    %v83 = vld [vmem:[#allocation7 + $0x28] sm:$0xff]
    %v84 = vld [vmem:[#allocation7 + $0x30] sm:$0xff]
    %v85 = vld [vmem:[#allocation7 + $0x38] sm:$0xff]
    %v86 = vld [vmem:[#allocation7 + $0x40] sm:$0xff]
    %v87 = vld [vmem:[#allocation7 + $0x48] sm:$0xff]
    %v88 = vld [vmem:[#allocation7 + $0x50] sm:$0xff]
    %v89 = vld [vmem:[#allocation7 + $0x58] sm:$0xff]
    %v90 = vld [vmem:[#allocation7 + $0x60] sm:$0xff]
    %v91 = vld [vmem:[#allocation7 + $0x68] sm:$0xff]
    %v92 = vld [vmem:[#allocation7 + $0x70] sm:$0xff]
    %v93 = vld [vmem:[#allocation7 + $0x78] sm:$0xff]
    %v94 = vld [vmem:[#allocation7 + $0x80] sm:$0xff]
    %v95 = vld [vmem:[#allocation7 + $0x88] sm:$0xff]
    %v96 = vld [vmem:[#allocation7 + $0x90] sm:$0xff]
    %v97 = vld [vmem:[#allocation7 + $0x98] sm:$0xff]
    %v98 = vld [vmem:[#allocation7 + $0xa0] sm:$0xff]
    %v99 = vld [vmem:[#allocation7 + $0xa8] sm:$0xff]
    %v100 = vld [vmem:[#allocation7 + $0xb0] sm:$0xff]
    %v101 = vld [vmem:[#allocation7 + $0xb8] sm:$0xff]
    %v102 = vld [vmem:[#allocation7 + $0xc0] sm:$0xff]
    %v103 = vld [vmem:[#allocation7 + $0xc8] sm:$0xff]
    %v104 = vld [vmem:[#allocation7 + $0xd0] sm:$0xff]
    %v105 = vld [vmem:[#allocation7 + $0xd8] sm:$0xff]
    %v106 = vld [vmem:[#allocation7 + $0xe0] sm:$0xff]
    %v107 = vld [vmem:[#allocation7 + $0xe8] sm:$0xff]
    %v108 = vld [vmem:[#allocation7 + $0xf0] sm:$0xff]
    %v109 = vld [vmem:[#allocation7 + $0xf8] sm:$0xff]
    %v110 = vld [vmem:[#allocation7 + $0x100] sm:$0xff]
    %v111 = vld [vmem:[#allocation7 + $0x108] sm:$0xff]
    %v112 = vld [vmem:[#allocation7 + $0x110] sm:$0xff]
    %v113 = vld [vmem:[#allocation7 + $0x118] sm:$0xff]
    %v114 = vld [vmem:[#allocation7 + $0x120] sm:$0xff]
    %v115 = vld [vmem:[#allocation7 + $0x128] sm:$0xff]
    %v116 = vld [vmem:[#allocation7 + $0x130] sm:$0xff]
    %v117 = vld [vmem:[#allocation7 + $0x138] sm:$0xff]
    %v118 = vld [vmem:[#allocation7 + $0x140] sm:$0xff]
    %v119 = vld [vmem:[#allocation7 + $0x148] sm:$0xff]
    %v120 = vld [vmem:[#allocation7 + $0x150] sm:$0xff]
    %v121 = vld [vmem:[#allocation7 + $0x158] sm:$0xff]
    %v122 = vld [vmem:[#allocation7 + $0x160] sm:$0xff]
    %v123 = vld [vmem:[#allocation7 + $0x168] sm:$0xff]
    %v124 = vld [vmem:[#allocation7 + $0x170] sm:$0xff]
    %v125 = vld [vmem:[#allocation7 + $0x178] sm:$0xff]
    %v126 = vld [vmem:[#allocation7 + $0x180] sm:$0xff]
    %v127 = vld [vmem:[#allocation7 + $0x188] sm:$0xff]
    %v128 = vld [vmem:[#allocation7 + $0x190] sm:$0xff]
    %v129 = vld [vmem:[#allocation7 + $0x198] sm:$0xff]
    %v130 = vld [vmem:[#allocation7 + $0x1a0] sm:$0xff]
    %v131 = vld [vmem:[#allocation7 + $0x1a8] sm:$0xff]
    %v132 = vld [vmem:[#allocation7 + $0x1b0] sm:$0xff]
    %v133 = vld [vmem:[#allocation7 + $0x1b8] sm:$0xff]
    %v134 = vld [vmem:[#allocation7 + $0x1c0] sm:$0xff]
    %v135 = vld [vmem:[#allocation7 + $0x1c8] sm:$0xff]
    %v136 = vld [vmem:[#allocation7 + $0x1d0] sm:$0xff]
    %v137 = vld [vmem:[#allocation7 + $0x1d8] sm:$0xff]
    %v138 = vld [vmem:[#allocation7 + $0x1e0] sm:$0xff]
    %v139 = vld [vmem:[#allocation7 + $0x1e8] sm:$0xff]
    %v140 = vld [vmem:[#allocation7 + $0x1f0] sm:$0xff]
    %v141 = vld [vmem:[#allocation7 + $0x1f8] sm:$0xff]
    %v142 = vld [vmem:[#allocation7 + $0x200] sm:$0xff]
    %v143 = vld [vmem:[#allocation7 + $0x208] sm:$0xff]
    %v144 = vld [vmem:[#allocation7 + $0x210] sm:$0xff]
    %v145 = vld [vmem:[#allocation7 + $0x218] sm:$0xff]
    %v146 = vld [vmem:[#allocation7 + $0x220] sm:$0xff]
    %v147 = vld [vmem:[#allocation7 + $0x228] sm:$0xff]
    %v148 = vld [vmem:[#allocation7 + $0x230] sm:$0xff]
    %v149 = vld [vmem:[#allocation7 + $0x238] sm:$0xff]
    %v150 = vld [vmem:[#allocation7 + $0x240] sm:$0xff]
    %v151 = vld [vmem:[#allocation7 + $0x248] sm:$0xff]
    %v152 = vld [vmem:[#allocation7 + $0x250] sm:$0xff]
    %v153 = vld [vmem:[#allocation7 + $0x258] sm:$0xff]
    %v154 = vld [vmem:[#allocation7 + $0x260] sm:$0xff]
    %v155 = vld [vmem:[#allocation7 + $0x268] sm:$0xff]
    %v156 = vld [vmem:[#allocation7 + $0x270] sm:$0xff]
    %v157 = vld [vmem:[#allocation7 + $0x278] sm:$0xff]
    %v158 = vld [vmem:[#allocation7 + $0x280] sm:$0xff]
    %v159 = vld [vmem:[#allocation7 + $0x288] sm:$0xff]
    %v160 = vld [vmem:[#allocation7 + $0x290] sm:$0xff]
    %v161 = vld [vmem:[#allocation7 + $0x298] sm:$0xff]
    %v162 = vld [vmem:[#allocation7 + $0x2a0] sm:$0xff]
    %v163 = vld [vmem:[#allocation7 + $0x2a8] sm:$0xff]
    %v164 = vld [vmem:[#allocation7 + $0x2b0] sm:$0xff]
    %v165 = vld [vmem:[#allocation7 + $0x2b8] sm:$0xff]
    %v166 = vld [vmem:[#allocation7 + $0x2c0] sm:$0xff]
    %v167 = vld [vmem:[#allocation7 + $0x2c8] sm:$0xff]
    %v168 = vld [vmem:[#allocation7 + $0x2d0] sm:$0xff]
    %v169 = vld [vmem:[#allocation7 + $0x2d8] sm:$0xff]
    %v170 = vld [vmem:[#allocation7 + $0x2e0] sm:$0xff]
    %v171 = vld [vmem:[#allocation7 + $0x2e8] sm:$0xff]
    %v172 = vld [vmem:[#allocation7 + $0x2f0] sm:$0xff]
    %v173 = vld [vmem:[#allocation7 + $0x2f8] sm:$0xff]
    %v174 = vld [vmem:[#allocation7 + $0x300] sm:$0xff]
    %v175 = vld [vmem:[#allocation7 + $0x308] sm:$0xff]
    %v176 = vld [vmem:[#allocation7 + $0x310] sm:$0xff]
    %v177 = vld [vmem:[#allocation7 + $0x318] sm:$0xff]
    %v178 = vld [vmem:[#allocation7 + $0x320] sm:$0xff]
    %v179 = vld [vmem:[#allocation7 + $0x328] sm:$0xff]
    %v180 = vld [vmem:[#allocation7 + $0x330] sm:$0xff]
    %v181 = vld [vmem:[#allocation7 + $0x338] sm:$0xff]
    %v182 = vld [vmem:[#allocation7 + $0x340] sm:$0xff]
    %v183 = vld [vmem:[#allocation7 + $0x348] sm:$0xff]
    %v184 = vld [vmem:[#allocation7 + $0x350] sm:$0xff]
    %v185 = vld [vmem:[#allocation7 + $0x358] sm:$0xff]
    %v186 = vld [vmem:[#allocation7 + $0x360] sm:$0xff]
    %v187 = vld [vmem:[#allocation7 + $0x368] sm:$0xff]
    %v188 = vld [vmem:[#allocation7 + $0x370] sm:$0xff]
    %v189 = vld [vmem:[#allocation7 + $0x378] sm:$0xff]
    %v190 = vld [vmem:[#allocation7 + $0x380] sm:$0xff]
    %v191 = vld [vmem:[#allocation7 + $0x388] sm:$0xff]
    %v192 = vld [vmem:[#allocation7 + $0x390] sm:$0xff]
    %v193 = vld [vmem:[#allocation7 + $0x398] sm:$0xff]
    %v194 = vld [vmem:[#allocation7 + $0x3a0] sm:$0xff]
    %v195 = vld [vmem:[#allocation7 + $0x3a8] sm:$0xff]
    %v196 = vld [vmem:[#allocation7 + $0x3b0] sm:$0xff]
    %v197 = vld [vmem:[#allocation7 + $0x3b8] sm:$0xff]
    %v198 = vld [vmem:[#allocation7 + $0x3c0] sm:$0xff]
    %v199 = vld [vmem:[#allocation7 + $0x3c8] sm:$0xff]
    %v200 = vld [vmem:[#allocation7 + $0x3d0] sm:$0xff]
    %v201 = vld [vmem:[#allocation7 + $0x3d8] sm:$0xff]
    %v202 = vld [vmem:[#allocation7 + $0x3e0] sm:$0xff]
    %v203 = vld [vmem:[#allocation7 + $0x3e8] sm:$0xff]
    %v204 = vld [vmem:[#allocation7 + $0x3f0] sm:$0xff]
    %v205 = vld [vmem:[#allocation7 + $0x3f8] sm:$0xff]
    %v206 = vld [vmem:[%s3] sm:$0x3]
    %v208 = vperm.slane %v206, 0
    %v209 = vperm.slane %v206, 1
    %v220 = vunpack.c.l.b16 %v70
    %v221 = vunpack.c.h.b16 %v70
    %v222 = vunpack.c.l.b16 %v71
    %v223 = vunpack.c.h.b16 %v71
    %v224 = vunpack.c.l.b16 %v72
    %v225 = vunpack.c.h.b16 %v72
    %v226 = vunpack.c.l.b16 %v73
    %v227 = vunpack.c.h.b16 %v73
    %v228 = vunpack.c.l.b16 %v74
    %v229 = vunpack.c.h.b16 %v74
    %v230 = vunpack.c.l.b16 %v75
    %v231 = vunpack.c.h.b16 %v75
    %v232 = vunpack.c.l.b16 %v76
    %v233 = vunpack.c.h.b16 %v76
    %v234 = vunpack.c.l.b16 %v77
    %v235 = vunpack.c.h.b16 %v77
    %v236 = vpack.c.b16 %v228, %v220
    %v237 = vpack.c.b16 %v229, %v221
    %v238 = vpack.c.b16 %v230, %v222
    %v239 = vpack.c.b16 %v231, %v223
    %v240 = vpack.c.b16 %v232, %v224
    %v241 = vpack.c.b16 %v233, %v225
    %v242 = vpack.c.b16 %v234, %v226
    %v243 = vpack.c.b16 %v235, %v227
    %v380 = vunpack.c.l.b16 %v78
    %v381 = vunpack.c.h.b16 %v78
    %v382 = vunpack.c.l.b16 %v79
    %v383 = vunpack.c.h.b16 %v79
    %v384 = vunpack.c.l.b16 %v80
    %v385 = vunpack.c.h.b16 %v80
    %v386 = vunpack.c.l.b16 %v81
    %v387 = vunpack.c.h.b16 %v81
    %v388 = vunpack.c.l.b16 %v82
    %v389 = vunpack.c.h.b16 %v82
    %v390 = vunpack.c.l.b16 %v83
    %v391 = vunpack.c.h.b16 %v83
    %v392 = vunpack.c.l.b16 %v84
    %v393 = vunpack.c.h.b16 %v84
    %v394 = vunpack.c.l.b16 %v85
    %v395 = vunpack.c.h.b16 %v85
    %v396 = vunpack.c.l.b16 %v86
    %v397 = vunpack.c.h.b16 %v86
    %v398 = vunpack.c.l.b16 %v87
    %v399 = vunpack.c.h.b16 %v87
    %v400 = vunpack.c.l.b16 %v88
    %v401 = vunpack.c.h.b16 %v88
    %v402 = vunpack.c.l.b16 %v89
    %v403 = vunpack.c.h.b16 %v89
    %v404 = vunpack.c.l.b16 %v90
    %v405 = vunpack.c.h.b16 %v90
    %v406 = vunpack.c.l.b16 %v91
    %v407 = vunpack.c.h.b16 %v91
    %v408 = vunpack.c.l.b16 %v92
    %v409 = vunpack.c.h.b16 %v92
    %v410 = vunpack.c.l.b16 %v93
    %v411 = vunpack.c.h.b16 %v93
    %v412 = vunpack.c.l.b16 %v94
    %v413 = vunpack.c.h.b16 %v94
    %v414 = vunpack.c.l.b16 %v95
    %v415 = vunpack.c.h.b16 %v95
    %v416 = vunpack.c.l.b16 %v96
    %v417 = vunpack.c.h.b16 %v96
    %v418 = vunpack.c.l.b16 %v97
    %v419 = vunpack.c.h.b16 %v97
    %v420 = vunpack.c.l.b16 %v98
    %v421 = vunpack.c.h.b16 %v98
    %v422 = vunpack.c.l.b16 %v99
    %v423 = vunpack.c.h.b16 %v99
    %v424 = vunpack.c.l.b16 %v100
    %v425 = vunpack.c.h.b16 %v100
    %v426 = vunpack.c.l.b16 %v101
    %v427 = vunpack.c.h.b16 %v101
    %v428 = vunpack.c.l.b16 %v102
    %v429 = vunpack.c.h.b16 %v102
    %v430 = vunpack.c.l.b16 %v103
    %v431 = vunpack.c.h.b16 %v103
    %v432 = vunpack.c.l.b16 %v104
    %v433 = vunpack.c.h.b16 %v104
    %v434 = vunpack.c.l.b16 %v105
    %v435 = vunpack.c.h.b16 %v105
    %v436 = vunpack.c.l.b16 %v106
    %v437 = vunpack.c.h.b16 %v106
    %v438 = vunpack.c.l.b16 %v107
    %v439 = vunpack.c.h.b16 %v107
    %v440 = vunpack.c.l.b16 %v108
    %v441 = vunpack.c.h.b16 %v108
    %v442 = vunpack.c.l.b16 %v109
    %v443 = vunpack.c.h.b16 %v109
    %v444 = vunpack.c.l.b16 %v110
    %v445 = vunpack.c.h.b16 %v110
    %v446 = vunpack.c.l.b16 %v111
    %v447 = vunpack.c.h.b16 %v111
    %v448 = vunpack.c.l.b16 %v112
    %v449 = vunpack.c.h.b16 %v112
    %v450 = vunpack.c.l.b16 %v113
    %v451 = vunpack.c.h.b16 %v113
    %v452 = vunpack.c.l.b16 %v114
    %v453 = vunpack.c.h.b16 %v114
    %v454 = vunpack.c.l.b16 %v115
    %v455 = vunpack.c.h.b16 %v115
    %v456 = vunpack.c.l.b16 %v116
    %v457 = vunpack.c.h.b16 %v116
    %v458 = vunpack.c.l.b16 %v117
    %v459 = vunpack.c.h.b16 %v117
    %v460 = vunpack.c.l.b16 %v118
    %v461 = vunpack.c.h.b16 %v118
    %v462 = vunpack.c.l.b16 %v119
    %v463 = vunpack.c.h.b16 %v119
    %v464 = vunpack.c.l.b16 %v120
    %v465 = vunpack.c.h.b16 %v120
    %v466 = vunpack.c.l.b16 %v121
    %v467 = vunpack.c.h.b16 %v121
    %v468 = vunpack.c.l.b16 %v122
    %v469 = vunpack.c.h.b16 %v122
    %v470 = vunpack.c.l.b16 %v123
    %v471 = vunpack.c.h.b16 %v123
    %v472 = vunpack.c.l.b16 %v124
    %v473 = vunpack.c.h.b16 %v124
    %v474 = vunpack.c.l.b16 %v125
    %v475 = vunpack.c.h.b16 %v125
    %v476 = vunpack.c.l.b16 %v126
    %v477 = vunpack.c.h.b16 %v126
    %v478 = vunpack.c.l.b16 %v127
    %v479 = vunpack.c.h.b16 %v127
    %v480 = vunpack.c.l.b16 %v128
    %v481 = vunpack.c.h.b16 %v128
    %v482 = vunpack.c.l.b16 %v129
    %v483 = vunpack.c.h.b16 %v129
    %v484 = vunpack.c.l.b16 %v130
    %v485 = vunpack.c.h.b16 %v130
    %v486 = vunpack.c.l.b16 %v131
    %v487 = vunpack.c.h.b16 %v131
    %v488 = vunpack.c.l.b16 %v132
    %v489 = vunpack.c.h.b16 %v132
    %v490 = vunpack.c.l.b16 %v133
    %v491 = vunpack.c.h.b16 %v133
    %v492 = vunpack.c.l.b16 %v134
    %v493 = vunpack.c.h.b16 %v134
    %v494 = vunpack.c.l.b16 %v135
    %v495 = vunpack.c.h.b16 %v135
    %v496 = vunpack.c.l.b16 %v136
    %v497 = vunpack.c.h.b16 %v136
    %v498 = vunpack.c.l.b16 %v137
    %v499 = vunpack.c.h.b16 %v137
    %v500 = vunpack.c.l.b16 %v138
    %v501 = vunpack.c.h.b16 %v138
    %v502 = vunpack.c.l.b16 %v139
    %v503 = vunpack.c.h.b16 %v139
    %v504 = vunpack.c.l.b16 %v140
    %v505 = vunpack.c.h.b16 %v140
    %v506 = vunpack.c.l.b16 %v141
    %v507 = vunpack.c.h.b16 %v141
    %v508 = vunpack.c.l.b16 %v142
    %v509 = vunpack.c.h.b16 %v142
    %v510 = vunpack.c.l.b16 %v143
    %v511 = vunpack.c.h.b16 %v143
    %v512 = vunpack.c.l.b16 %v144
    %v513 = vunpack.c.h.b16 %v144
    %v514 = vunpack.c.l.b16 %v145
    %v515 = vunpack.c.h.b16 %v145
    %v516 = vunpack.c.l.b16 %v146
    %v517 = vunpack.c.h.b16 %v146
    %v518 = vunpack.c.l.b16 %v147
    %v519 = vunpack.c.h.b16 %v147
    %v520 = vunpack.c.l.b16 %v148
    %v521 = vunpack.c.h.b16 %v148
    %v522 = vunpack.c.l.b16 %v149
    %v523 = vunpack.c.h.b16 %v149
    %v524 = vunpack.c.l.b16 %v150
    %v525 = vunpack.c.h.b16 %v150
    %v526 = vunpack.c.l.b16 %v151
    %v527 = vunpack.c.h.b16 %v151
    %v528 = vunpack.c.l.b16 %v152
    %v529 = vunpack.c.h.b16 %v152
    %v530 = vunpack.c.l.b16 %v153
    %v531 = vunpack.c.h.b16 %v153
    %v532 = vunpack.c.l.b16 %v154
    %v533 = vunpack.c.h.b16 %v154
    %v534 = vunpack.c.l.b16 %v155
    %v535 = vunpack.c.h.b16 %v155
    %v536 = vunpack.c.l.b16 %v156
    %v537 = vunpack.c.h.b16 %v156
    %v538 = vunpack.c.l.b16 %v157
    %v539 = vunpack.c.h.b16 %v157
    %v540 = vunpack.c.l.b16 %v158
    %v541 = vunpack.c.h.b16 %v158
    %v542 = vunpack.c.l.b16 %v159
    %v543 = vunpack.c.h.b16 %v159
    %v544 = vunpack.c.l.b16 %v160
    %v545 = vunpack.c.h.b16 %v160
    %v546 = vunpack.c.l.b16 %v161
    %v547 = vunpack.c.h.b16 %v161
    %v548 = vunpack.c.l.b16 %v162
    %v549 = vunpack.c.h.b16 %v162
    %v550 = vunpack.c.l.b16 %v163
    %v551 = vunpack.c.h.b16 %v163
    %v552 = vunpack.c.l.b16 %v164
    %v553 = vunpack.c.h.b16 %v164
    %v554 = vunpack.c.l.b16 %v165
    %v555 = vunpack.c.h.b16 %v165
    %v556 = vunpack.c.l.b16 %v166
    %v557 = vunpack.c.h.b16 %v166
    %v558 = vunpack.c.l.b16 %v167
    %v559 = vunpack.c.h.b16 %v167
    %v560 = vunpack.c.l.b16 %v168
    %v561 = vunpack.c.h.b16 %v168
    %v562 = vunpack.c.l.b16 %v169
    %v563 = vunpack.c.h.b16 %v169
    %v564 = vunpack.c.l.b16 %v170
    %v565 = vunpack.c.h.b16 %v170
    %v566 = vunpack.c.l.b16 %v171
    %v567 = vunpack.c.h.b16 %v171
    %v568 = vunpack.c.l.b16 %v172
    %v569 = vunpack.c.h.b16 %v172
    %v570 = vunpack.c.l.b16 %v173
    %v571 = vunpack.c.h.b16 %v173
    %v572 = vunpack.c.l.b16 %v174
    %v573 = vunpack.c.h.b16 %v174
    %v574 = vunpack.c.l.b16 %v175
    %v575 = vunpack.c.h.b16 %v175
    %v576 = vunpack.c.l.b16 %v176
    %v577 = vunpack.c.h.b16 %v176
    %v578 = vunpack.c.l.b16 %v177
    %v579 = vunpack.c.h.b16 %v177
    %v580 = vunpack.c.l.b16 %v178
    %v581 = vunpack.c.h.b16 %v178
    %v582 = vunpack.c.l.b16 %v179
    %v583 = vunpack.c.h.b16 %v179
    %v584 = vunpack.c.l.b16 %v180
    %v585 = vunpack.c.h.b16 %v180
    %v586 = vunpack.c.l.b16 %v181
    %v587 = vunpack.c.h.b16 %v181
    %v588 = vunpack.c.l.b16 %v182
    %v589 = vunpack.c.h.b16 %v182
    %v590 = vunpack.c.l.b16 %v183
    %v591 = vunpack.c.h.b16 %v183
    %v592 = vunpack.c.l.b16 %v184
    %v593 = vunpack.c.h.b16 %v184
    %v594 = vunpack.c.l.b16 %v185
    %v595 = vunpack.c.h.b16 %v185
    %v596 = vunpack.c.l.b16 %v186
    %v597 = vunpack.c.h.b16 %v186
    %v598 = vunpack.c.l.b16 %v187
    %v599 = vunpack.c.h.b16 %v187
    %v600 = vunpack.c.l.b16 %v188
    %v601 = vunpack.c.h.b16 %v188
    %v602 = vunpack.c.l.b16 %v189
    %v603 = vunpack.c.h.b16 %v189
    %v604 = vunpack.c.l.b16 %v190
    %v605 = vunpack.c.h.b16 %v190
    %v606 = vunpack.c.l.b16 %v191
    %v607 = vunpack.c.h.b16 %v191
    %v608 = vunpack.c.l.b16 %v192
    %v609 = vunpack.c.h.b16 %v192
    %v610 = vunpack.c.l.b16 %v193
    %v611 = vunpack.c.h.b16 %v193
    %v612 = vunpack.c.l.b16 %v194
    %v613 = vunpack.c.h.b16 %v194
    %v614 = vunpack.c.l.b16 %v195
    %v615 = vunpack.c.h.b16 %v195
    %v616 = vunpack.c.l.b16 %v196
    %v617 = vunpack.c.h.b16 %v196
    %v618 = vunpack.c.l.b16 %v197
    %v619 = vunpack.c.h.b16 %v197
    %v620 = vunpack.c.l.b16 %v198
    %v621 = vunpack.c.h.b16 %v198
    %v622 = vunpack.c.l.b16 %v199
    %v623 = vunpack.c.h.b16 %v199
    %v624 = vunpack.c.l.b16 %v200
    %v625 = vunpack.c.h.b16 %v200
    %v626 = vunpack.c.l.b16 %v201
    %v627 = vunpack.c.h.b16 %v201
    %v628 = vunpack.c.l.b16 %v202
    %v629 = vunpack.c.h.b16 %v202
    %v630 = vunpack.c.l.b16 %v203
    %v631 = vunpack.c.h.b16 %v203
    %v632 = vunpack.c.l.b16 %v204
    %v633 = vunpack.c.h.b16 %v204
    %v634 = vunpack.c.l.b16 %v205
    %v635 = vunpack.c.h.b16 %v205
    %v636 = vpack.c.b16 %v382, %v380
    %v637 = vpack.c.b16 %v383, %v381
    %v638 = vpack.c.b16 %v386, %v384
    %v639 = vpack.c.b16 %v387, %v385
    %v640 = vpack.c.b16 %v390, %v388
    %v641 = vpack.c.b16 %v391, %v389
    %v642 = vpack.c.b16 %v394, %v392
    %v643 = vpack.c.b16 %v395, %v393
    %v644 = vpack.c.b16 %v398, %v396
    %v645 = vpack.c.b16 %v399, %v397
    %v646 = vpack.c.b16 %v402, %v400
    %v647 = vpack.c.b16 %v403, %v401
    %v648 = vpack.c.b16 %v406, %v404
    %v649 = vpack.c.b16 %v407, %v405
    %v650 = vpack.c.b16 %v410, %v408
    %v651 = vpack.c.b16 %v411, %v409
    %v652 = vpack.c.b16 %v414, %v412
    %v653 = vpack.c.b16 %v415, %v413
    %v654 = vpack.c.b16 %v418, %v416
    %v655 = vpack.c.b16 %v419, %v417
    %v656 = vpack.c.b16 %v422, %v420
    %v657 = vpack.c.b16 %v423, %v421
    %v658 = vpack.c.b16 %v426, %v424
    %v659 = vpack.c.b16 %v427, %v425
    %v660 = vpack.c.b16 %v430, %v428
    %v661 = vpack.c.b16 %v431, %v429
    %v662 = vpack.c.b16 %v434, %v432
    %v663 = vpack.c.b16 %v435, %v433
    %v664 = vpack.c.b16 %v438, %v436
    %v665 = vpack.c.b16 %v439, %v437
    %v666 = vpack.c.b16 %v442, %v440
    %v667 = vpack.c.b16 %v443, %v441
    %v668 = vpack.c.b16 %v446, %v444
    %v669 = vpack.c.b16 %v447, %v445
    %v670 = vpack.c.b16 %v450, %v448
    %v671 = vpack.c.b16 %v451, %v449
    %v672 = vpack.c.b16 %v454, %v452
    %v673 = vpack.c.b16 %v455, %v453
    %v674 = vpack.c.b16 %v458, %v456
    %v675 = vpack.c.b16 %v459, %v457
    %v676 = vpack.c.b16 %v462, %v460
    %v677 = vpack.c.b16 %v463, %v461
    %v678 = vpack.c.b16 %v466, %v464
    %v679 = vpack.c.b16 %v467, %v465
    %v680 = vpack.c.b16 %v470, %v468
    %v681 = vpack.c.b16 %v471, %v469
    %v682 = vpack.c.b16 %v474, %v472
    %v683 = vpack.c.b16 %v475, %v473
    %v684 = vpack.c.b16 %v478, %v476
    %v685 = vpack.c.b16 %v479, %v477
    %v686 = vpack.c.b16 %v482, %v480
    %v687 = vpack.c.b16 %v483, %v481
    %v688 = vpack.c.b16 %v486, %v484
    %v689 = vpack.c.b16 %v487, %v485
    %v690 = vpack.c.b16 %v490, %v488
    %v691 = vpack.c.b16 %v491, %v489
    %v692 = vpack.c.b16 %v494, %v492
    %v693 = vpack.c.b16 %v495, %v493
    %v694 = vpack.c.b16 %v498, %v496
    %v695 = vpack.c.b16 %v499, %v497
    %v696 = vpack.c.b16 %v502, %v500
    %v697 = vpack.c.b16 %v503, %v501
    %v698 = vpack.c.b16 %v506, %v504
    %v699 = vpack.c.b16 %v507, %v505
    %v700 = vpack.c.b16 %v510, %v508
    %v701 = vpack.c.b16 %v511, %v509
    %v702 = vpack.c.b16 %v514, %v512
    %v703 = vpack.c.b16 %v515, %v513
    %v704 = vpack.c.b16 %v518, %v516
    %v705 = vpack.c.b16 %v519, %v517
    %v706 = vpack.c.b16 %v522, %v520
    %v707 = vpack.c.b16 %v523, %v521
    %v708 = vpack.c.b16 %v526, %v524
    %v709 = vpack.c.b16 %v527, %v525
    %v710 = vpack.c.b16 %v530, %v528
    %v711 = vpack.c.b16 %v531, %v529
    %v712 = vpack.c.b16 %v534, %v532
    %v713 = vpack.c.b16 %v535, %v533
    %v714 = vpack.c.b16 %v538, %v536
    %v715 = vpack.c.b16 %v539, %v537
    %v716 = vpack.c.b16 %v542, %v540
    %v717 = vpack.c.b16 %v543, %v541
    %v718 = vpack.c.b16 %v546, %v544
    %v719 = vpack.c.b16 %v547, %v545
    %v720 = vpack.c.b16 %v550, %v548
    %v721 = vpack.c.b16 %v551, %v549
    %v722 = vpack.c.b16 %v554, %v552
    %v723 = vpack.c.b16 %v555, %v553
    %v724 = vpack.c.b16 %v558, %v556
    %v725 = vpack.c.b16 %v559, %v557
    %v726 = vpack.c.b16 %v562, %v560
    %v727 = vpack.c.b16 %v563, %v561
    %v728 = vpack.c.b16 %v566, %v564
    %v729 = vpack.c.b16 %v567, %v565
    %v730 = vpack.c.b16 %v570, %v568
    %v731 = vpack.c.b16 %v571, %v569
    %v732 = vpack.c.b16 %v574, %v572
    %v733 = vpack.c.b16 %v575, %v573
    %v734 = vpack.c.b16 %v578, %v576
    %v735 = vpack.c.b16 %v579, %v577
    %v736 = vpack.c.b16 %v582, %v580
    %v737 = vpack.c.b16 %v583, %v581
    %v738 = vpack.c.b16 %v586, %v584
    %v739 = vpack.c.b16 %v587, %v585
    %v740 = vpack.c.b16 %v590, %v588
    %v741 = vpack.c.b16 %v591, %v589
    %v742 = vpack.c.b16 %v594, %v592
    %v743 = vpack.c.b16 %v595, %v593
    %v744 = vpack.c.b16 %v598, %v596
    %v745 = vpack.c.b16 %v599, %v597
    %v746 = vpack.c.b16 %v602, %v600
    %v747 = vpack.c.b16 %v603, %v601
    %v748 = vpack.c.b16 %v606, %v604
    %v749 = vpack.c.b16 %v607, %v605
    %v750 = vpack.c.b16 %v610, %v608
    %v751 = vpack.c.b16 %v611, %v609
    %v752 = vpack.c.b16 %v614, %v612
    %v753 = vpack.c.b16 %v615, %v613
    %v754 = vpack.c.b16 %v618, %v616
    %v755 = vpack.c.b16 %v619, %v617
    %v756 = vpack.c.b16 %v622, %v620
    %v757 = vpack.c.b16 %v623, %v621
    %v758 = vpack.c.b16 %v626, %v624
    %v759 = vpack.c.b16 %v627, %v625
    %v760 = vpack.c.b16 %v630, %v628
    %v761 = vpack.c.b16 %v631, %v629
    %v762 = vpack.c.b16 %v634, %v632
    %v763 = vpack.c.b16 %v635, %v633
    %892 = vmatpush.bf16.msra.mxu0 %v650
    %893 = vmatpush.bf16.msra.mxu0 %v648
    %894 = vmatpush.bf16.msra.mxu0 %v646
    %895 = vmatpush.bf16.msra.mxu0 %v644
    %896 = vmatpush.bf16.msra.mxu0 %v642
    %897 = vmatpush.bf16.msra.mxu0 %v640
    %898 = vmatpush.bf16.msra.mxu0 %v638
    %899 = vmatpush.bf16.msra.mxu0 %v636
    %900 = vmatmul.bf16.gmra.mxu0 %v236
    %v901 = vpop.f32.mrf.mxu0
    %v902 = vadd.f32 %v208, %v901
    %v903 = vpop.f32.mrf.mxu0
    %v904 = vadd.f32 %v208, %v903
    %905 = vdwg.mxu0
    %906 = vmatpush.bf16.msra.mxu0 %v666
    %907 = vmatpush.bf16.msra.mxu0 %v664
    %908 = vmatpush.bf16.msra.mxu0 %v662
    %909 = vmatpush.bf16.msra.mxu0 %v660
    %910 = vmatpush.bf16.msra.mxu0 %v658
    %911 = vmatpush.bf16.msra.mxu0 %v656
    %912 = vmatpush.bf16.msra.mxu0 %v654
    %913 = vmatpush.bf16.msra.mxu0 %v652
    %914 = vmatmul.bf16.gmra.mxu0 %v237
    %v915 = vpop.f32.mrf.mxu0
    %v916 = vadd.f32 %v902, %v915
    %v917 = vpop.f32.mrf.mxu0
    %v918 = vadd.f32 %v904, %v917
    %919 = vdwg.mxu0
    %920 = vmatpush.bf16.msra.mxu0 %v682
    %921 = vmatpush.bf16.msra.mxu0 %v680
    %922 = vmatpush.bf16.msra.mxu0 %v678
    %923 = vmatpush.bf16.msra.mxu0 %v676
    %924 = vmatpush.bf16.msra.mxu0 %v674
    %925 = vmatpush.bf16.msra.mxu0 %v672
    %926 = vmatpush.bf16.msra.mxu0 %v670
    %927 = vmatpush.bf16.msra.mxu0 %v668
    %928 = vmatmul.bf16.gmra.mxu0 %v238
    %v929 = vpop.f32.mrf.mxu0
    %v930 = vadd.f32 %v916, %v929
    %v931 = vpop.f32.mrf.mxu0
    %v932 = vadd.f32 %v918, %v931
    %933 = vdwg.mxu0
    %934 = vmatpush.bf16.msra.mxu0 %v698
    %935 = vmatpush.bf16.msra.mxu0 %v696
    %936 = vmatpush.bf16.msra.mxu0 %v694
    %937 = vmatpush.bf16.msra.mxu0 %v692
    %938 = vmatpush.bf16.msra.mxu0 %v690
    %939 = vmatpush.bf16.msra.mxu0 %v688
    %940 = vmatpush.bf16.msra.mxu0 %v686
    %941 = vmatpush.bf16.msra.mxu0 %v684
    %942 = vmatmul.bf16.gmra.mxu0 %v239
    %v943 = vpop.f32.mrf.mxu0
    %v944 = vadd.f32 %v930, %v943
    %v945 = vpop.f32.mrf.mxu0
    %v946 = vadd.f32 %v932, %v945
    %947 = vdwg.mxu0
    %948 = vmatpush.bf16.msra.mxu0 %v714
    %949 = vmatpush.bf16.msra.mxu0 %v712
    %950 = vmatpush.bf16.msra.mxu0 %v710
    %951 = vmatpush.bf16.msra.mxu0 %v708
    %952 = vmatpush.bf16.msra.mxu0 %v706
    %953 = vmatpush.bf16.msra.mxu0 %v704
    %954 = vmatpush.bf16.msra.mxu0 %v702
    %955 = vmatpush.bf16.msra.mxu0 %v700
    %956 = vmatmul.bf16.gmra.mxu0 %v240
    %v957 = vpop.f32.mrf.mxu0
    %v958 = vadd.f32 %v944, %v957
    %v959 = vpop.f32.mrf.mxu0
    %v960 = vadd.f32 %v946, %v959
    %961 = vdwg.mxu0
    %962 = vmatpush.bf16.msra.mxu0 %v730
    %963 = vmatpush.bf16.msra.mxu0 %v728
    %964 = vmatpush.bf16.msra.mxu0 %v726
    %965 = vmatpush.bf16.msra.mxu0 %v724
    %966 = vmatpush.bf16.msra.mxu0 %v722
    %967 = vmatpush.bf16.msra.mxu0 %v720
    %968 = vmatpush.bf16.msra.mxu0 %v718
    %969 = vmatpush.bf16.msra.mxu0 %v716
    %970 = vmatmul.bf16.gmra.mxu0 %v241
    %v971 = vpop.f32.mrf.mxu0
    %v972 = vadd.f32 %v958, %v971
    %v973 = vpop.f32.mrf.mxu0
    %v974 = vadd.f32 %v960, %v973
    %975 = vdwg.mxu0
    %976 = vmatpush.bf16.msra.mxu0 %v746
    %977 = vmatpush.bf16.msra.mxu0 %v744
    %978 = vmatpush.bf16.msra.mxu0 %v742
    %979 = vmatpush.bf16.msra.mxu0 %v740
    %980 = vmatpush.bf16.msra.mxu0 %v738
    %981 = vmatpush.bf16.msra.mxu0 %v736
    %982 = vmatpush.bf16.msra.mxu0 %v734
    %983 = vmatpush.bf16.msra.mxu0 %v732
    %984 = vmatmul.bf16.gmra.mxu0 %v242
    %v985 = vpop.f32.mrf.mxu0
    %v986 = vadd.f32 %v972, %v985
    %v987 = vpop.f32.mrf.mxu0
    %v988 = vadd.f32 %v974, %v987
    %989 = vdwg.mxu0
    %990 = vmatpush.bf16.msra.mxu0 %v762
    %991 = vmatpush.bf16.msra.mxu0 %v760
    %992 = vmatpush.bf16.msra.mxu0 %v758
    %993 = vmatpush.bf16.msra.mxu0 %v756
    %994 = vmatpush.bf16.msra.mxu0 %v754
    %995 = vmatpush.bf16.msra.mxu0 %v752
    %996 = vmatpush.bf16.msra.mxu0 %v750
    %997 = vmatpush.bf16.msra.mxu0 %v748
    %998 = vmatmul.bf16.gmra.mxu0 %v243
    %v999 = vpop.f32.mrf.mxu0
    %v1000 = vadd.f32 %v986, %v999
    %v1001 = vpop.f32.mrf.mxu0
    %v1002 = vadd.f32 %v988, %v1001
    %1003 = vdwg.mxu0
    %1004 = vmatpush.bf16.msra.mxu0 %v651
    %1005 = vmatpush.bf16.msra.mxu0 %v649
    %1006 = vmatpush.bf16.msra.mxu0 %v647
    %1007 = vmatpush.bf16.msra.mxu0 %v645
    %1008 = vmatpush.bf16.msra.mxu0 %v643
    %1009 = vmatpush.bf16.msra.mxu0 %v641
    %1010 = vmatpush.bf16.msra.mxu0 %v639
    %1011 = vmatpush.bf16.msra.mxu0 %v637
    %1012 = vmatmul.bf16.gmra.mxu0 %v236
    %v1013 = vpop.f32.mrf.mxu0
    %v1014 = vadd.f32 %v209, %v1013
    %v1015 = vpop.f32.mrf.mxu0
    %v1016 = vadd.f32 %v209, %v1015
    %1017 = vdwg.mxu0
    %1018 = vmatpush.bf16.msra.mxu0 %v667
    %1019 = vmatpush.bf16.msra.mxu0 %v665
    %1020 = vmatpush.bf16.msra.mxu0 %v663
    %1021 = vmatpush.bf16.msra.mxu0 %v661
    %1022 = vmatpush.bf16.msra.mxu0 %v659
    %1023 = vmatpush.bf16.msra.mxu0 %v657
    %1024 = vmatpush.bf16.msra.mxu0 %v655
    %1025 = vmatpush.bf16.msra.mxu0 %v653
    %1026 = vmatmul.bf16.gmra.mxu0 %v237
    %v1027 = vpop.f32.mrf.mxu0
    %v1028 = vadd.f32 %v1014, %v1027
    %v1029 = vpop.f32.mrf.mxu0
    %v1030 = vadd.f32 %v1016, %v1029
    %1031 = vdwg.mxu0
    %1032 = vmatpush.bf16.msra.mxu0 %v683
    %1033 = vmatpush.bf16.msra.mxu0 %v681
    %1034 = vmatpush.bf16.msra.mxu0 %v679
    %1035 = vmatpush.bf16.msra.mxu0 %v677
    %1036 = vmatpush.bf16.msra.mxu0 %v675
    %1037 = vmatpush.bf16.msra.mxu0 %v673
    %1038 = vmatpush.bf16.msra.mxu0 %v671
    %1039 = vmatpush.bf16.msra.mxu0 %v669
    %1040 = vmatmul.bf16.gmra.mxu0 %v238
    %v1041 = vpop.f32.mrf.mxu0
    %v1042 = vadd.f32 %v1028, %v1041
    %v1043 = vpop.f32.mrf.mxu0
    %v1044 = vadd.f32 %v1030, %v1043
    %1045 = vdwg.mxu0
    %1046 = vmatpush.bf16.msra.mxu0 %v699
    %1047 = vmatpush.bf16.msra.mxu0 %v697
    %1048 = vmatpush.bf16.msra.mxu0 %v695
    %1049 = vmatpush.bf16.msra.mxu0 %v693
    %1050 = vmatpush.bf16.msra.mxu0 %v691
    %1051 = vmatpush.bf16.msra.mxu0 %v689
    %1052 = vmatpush.bf16.msra.mxu0 %v687
    %1053 = vmatpush.bf16.msra.mxu0 %v685
    %1054 = vmatmul.bf16.gmra.mxu0 %v239
    %v1055 = vpop.f32.mrf.mxu0
    %v1056 = vadd.f32 %v1042, %v1055
    %v1057 = vpop.f32.mrf.mxu0
    %v1058 = vadd.f32 %v1044, %v1057
    %1059 = vdwg.mxu0
    %1060 = vmatpush.bf16.msra.mxu0 %v715
    %1061 = vmatpush.bf16.msra.mxu0 %v713
    %1062 = vmatpush.bf16.msra.mxu0 %v711
    %1063 = vmatpush.bf16.msra.mxu0 %v709
    %1064 = vmatpush.bf16.msra.mxu0 %v707
    %1065 = vmatpush.bf16.msra.mxu0 %v705
    %1066 = vmatpush.bf16.msra.mxu0 %v703
    %1067 = vmatpush.bf16.msra.mxu0 %v701
    %1068 = vmatmul.bf16.gmra.mxu0 %v240
    %v1069 = vpop.f32.mrf.mxu0
    %v1070 = vadd.f32 %v1056, %v1069
    %v1071 = vpop.f32.mrf.mxu0
    %v1072 = vadd.f32 %v1058, %v1071
    %1073 = vdwg.mxu0
    %1074 = vmatpush.bf16.msra.mxu0 %v731
    %1075 = vmatpush.bf16.msra.mxu0 %v729
    %1076 = vmatpush.bf16.msra.mxu0 %v727
    %1077 = vmatpush.bf16.msra.mxu0 %v725
    %1078 = vmatpush.bf16.msra.mxu0 %v723
    %1079 = vmatpush.bf16.msra.mxu0 %v721
    %1080 = vmatpush.bf16.msra.mxu0 %v719
    %1081 = vmatpush.bf16.msra.mxu0 %v717
    %1082 = vmatmul.bf16.gmra.mxu0 %v241
    %v1083 = vpop.f32.mrf.mxu0
    %v1084 = vadd.f32 %v1070, %v1083
    %v1085 = vpop.f32.mrf.mxu0
    %v1086 = vadd.f32 %v1072, %v1085
    %1087 = vdwg.mxu0
    %1088 = vmatpush.bf16.msra.mxu0 %v747
    %1089 = vmatpush.bf16.msra.mxu0 %v745
    %1090 = vmatpush.bf16.msra.mxu0 %v743
    %1091 = vmatpush.bf16.msra.mxu0 %v741
    %1092 = vmatpush.bf16.msra.mxu0 %v739
    %1093 = vmatpush.bf16.msra.mxu0 %v737
    %1094 = vmatpush.bf16.msra.mxu0 %v735
    %1095 = vmatpush.bf16.msra.mxu0 %v733
    %1096 = vmatmul.bf16.gmra.mxu0 %v242
    %v1097 = vpop.f32.mrf.mxu0
    %v1098 = vadd.f32 %v1084, %v1097
    %v1099 = vpop.f32.mrf.mxu0
    %v1100 = vadd.f32 %v1086, %v1099
    %1101 = vdwg.mxu0
    %1102 = vmatpush.bf16.msra.mxu0 %v763
    %1103 = vmatpush.bf16.msra.mxu0 %v761
    %1104 = vmatpush.bf16.msra.mxu0 %v759
    %1105 = vmatpush.bf16.msra.mxu0 %v757
    %1106 = vmatpush.bf16.msra.mxu0 %v755
    %1107 = vmatpush.bf16.msra.mxu0 %v753
    %1108 = vmatpush.bf16.msra.mxu0 %v751
    %1109 = vmatpush.bf16.msra.mxu0 %v749
    %1110 = vmatmul.bf16.gmra.mxu0 %v243
    %v1111 = vpop.f32.mrf.mxu0
    %v1112 = vadd.f32 %v1098, %v1111
    %v1113 = vpop.f32.mrf.mxu0
    %v1114 = vadd.f32 %v1100, %v1113
    %1115 = vdwg.mxu0
    %v1116 = vmax.f32 %v1000, 0.0
    %v1117 = vmax.f32 %v1112, 0.0
    %v1118 = vmax.f32 %v1002, 0.0
    %v1119 = vmax.f32 %v1114, 0.0
    %s1120 = smul.u32 0, 16
    %v1121 = vlaneseq
    %v1122 = vshrl.u32 %v1121, 7
    %v1123 = vadd.s32 %v1122, 8
    %v1124 = vstv %s1120
    %v1125 = vadd.s32 %v1122, %v1124
    %v1126 = vadd.s32 %v1123, %v1124
    %v1127 = vlaneseq
    %v1128 = vand.u32 %v1127, 127
    %v1129 = vadd.s32 %v1128, 128
    %s1130 = sld [smem:[#allocation3]]
    %v1131 = vmul.u32 %v1125, 2654435761
    %v1132 = vmul.u32 %v1126, 2654435761
    %v1133 = vmul.u32 %v1128, 2246822519
    %v1134 = vmul.u32 %v1129, 2246822519
    %v1135 = vxor.u32 %v1131, %v1133
    %v1136 = vxor.u32 %v1131, %v1134
    %v1137 = vxor.u32 %v1132, %v1133
    %v1138 = vxor.u32 %v1132, %v1134
    %v1139 = vstv %s1130
    %v1140 = vxor.u32 %v1135, %v1139
    %v1141 = vxor.u32 %v1136, %v1139
    %v1142 = vxor.u32 %v1137, %v1139
    %v1143 = vxor.u32 %v1138, %v1139
    %v1144 = vshrl.u32 %v1140, 16
    %v1145 = vshrl.u32 %v1141, 16
    %v1146 = vshrl.u32 %v1142, 16
    %v1147 = vshrl.u32 %v1143, 16
    %v1148 = vxor.u32 %v1140, %v1144
    %v1149 = vxor.u32 %v1141, %v1145
    %v1150 = vxor.u32 %v1142, %v1146
    %v1151 = vxor.u32 %v1143, %v1147
    %v1152 = vmul.u32 %v1148, 2146121005
    %v1153 = vmul.u32 %v1149, 2146121005
    %v1154 = vmul.u32 %v1150, 2146121005
    %v1155 = vmul.u32 %v1151, 2146121005
    %v1156 = vshrl.u32 %v1152, 15
    %v1157 = vshrl.u32 %v1153, 15
    %v1158 = vshrl.u32 %v1154, 15
    %v1159 = vshrl.u32 %v1155, 15
    %v1160 = vxor.u32 %v1152, %v1156
    %v1161 = vxor.u32 %v1153, %v1157
    %v1162 = vxor.u32 %v1154, %v1158
    %v1163 = vxor.u32 %v1155, %v1159
    %v1164 = vmul.u32 %v1160, 2221713035
    %v1165 = vmul.u32 %v1161, 2221713035
    %v1166 = vmul.u32 %v1162, 2221713035
    %v1167 = vmul.u32 %v1163, 2221713035
    %v1168 = vshrl.u32 %v1164, 16
    %v1169 = vshrl.u32 %v1165, 16
    %v1170 = vshrl.u32 %v1166, 16
    %v1171 = vshrl.u32 %v1167, 16
    %v1172 = vxor.u32 %v1164, %v1168
    %v1173 = vxor.u32 %v1165, %v1169
    %v1174 = vxor.u32 %v1166, %v1170
    %v1175 = vxor.u32 %v1167, %v1171
    %v1176 = vadd.s32 %v1172, 2147483648
    %vm1178 = vcmp.ge.s32.totalorder %v1176, 0
    %v1179 = vadd.s32 %v1173, 2147483648
    %vm1181 = vcmp.ge.s32.totalorder %v1179, 0
    %v1182 = vadd.s32 %v1174, 2147483648
    %vm1184 = vcmp.ge.s32.totalorder %v1182, 0
    %v1185 = vadd.s32 %v1175, 2147483648
    %vm1187 = vcmp.ge.s32.totalorder %v1185, 0
    %v1188 = vmul.f32 %v1116, 2.0
    %v1189 = vmul.f32 %v1117, 2.0
    %v1190 = vmul.f32 %v1118, 2.0
    %v1191 = vmul.f32 %v1119, 2.0
    %v1192 = vsel %vm1178, %v1188, 0.0
    %v1193 = vsel %vm1181, %v1189, 0.0
    %v1194 = vsel %vm1184, %v1190, 0.0
    %v1195 = vsel %vm1187, %v1191, 0.0
    %v1196 = vpack.c.bf16 %v1194, %v1192
    %v1197 = vpack.c.bf16 %v1195, %v1193
    %v1198 = vld [vmem:[#allocation9] sm:$0xf]
    %v1199 = vld [vmem:[#allocation9 + $0x4] sm:$0xf]
    %v1200 = vld [vmem:[#allocation9 + $0x8] sm:$0xf]
    %v1201 = vld [vmem:[#allocation9 + $0xc] sm:$0xf]
    %v1202 = vld [vmem:[#allocation9 + $0x10] sm:$0xf]
    %v1203 = vld [vmem:[#allocation9 + $0x14] sm:$0xf]
    %v1204 = vld [vmem:[#allocation9 + $0x18] sm:$0xf]
    %v1205 = vld [vmem:[#allocation9 + $0x1c] sm:$0xf]
    %v1206 = vld [vmem:[#allocation9 + $0x20] sm:$0xf]
    %v1207 = vld [vmem:[#allocation9 + $0x24] sm:$0xf]
    %v1208 = vld [vmem:[#allocation9 + $0x28] sm:$0xf]
    %v1209 = vld [vmem:[#allocation9 + $0x2c] sm:$0xf]
    %v1210 = vld [vmem:[#allocation9 + $0x30] sm:$0xf]
    %v1211 = vld [vmem:[#allocation9 + $0x34] sm:$0xf]
    %v1212 = vld [vmem:[#allocation9 + $0x38] sm:$0xf]
    %v1213 = vld [vmem:[#allocation9 + $0x3c] sm:$0xf]
    %v1214 = vld [vmem:[#allocation9 + $0x40] sm:$0xf]
    %v1215 = vld [vmem:[#allocation9 + $0x44] sm:$0xf]
    %v1216 = vld [vmem:[#allocation9 + $0x48] sm:$0xf]
    %v1217 = vld [vmem:[#allocation9 + $0x4c] sm:$0xf]
    %v1218 = vld [vmem:[#allocation9 + $0x50] sm:$0xf]
    %v1219 = vld [vmem:[#allocation9 + $0x54] sm:$0xf]
    %v1220 = vld [vmem:[#allocation9 + $0x58] sm:$0xf]
    %v1221 = vld [vmem:[#allocation9 + $0x5c] sm:$0xf]
    %v1222 = vld [vmem:[#allocation9 + $0x60] sm:$0xf]
    %v1223 = vld [vmem:[#allocation9 + $0x64] sm:$0xf]
    %v1224 = vld [vmem:[#allocation9 + $0x68] sm:$0xf]
    %v1225 = vld [vmem:[#allocation9 + $0x6c] sm:$0xf]
    %v1226 = vld [vmem:[#allocation9 + $0x70] sm:$0xf]
    %v1227 = vld [vmem:[#allocation9 + $0x74] sm:$0xf]
    %v1228 = vld [vmem:[#allocation9 + $0x78] sm:$0xf]
    %v1229 = vld [vmem:[#allocation9 + $0x7c] sm:$0xf]
    %v1230 = vld [vmem:[%s5] sm:$0x1]
    %v1232 = vperm.slane %v1230, 0
    %v1266 = vunpack.c.l.b16 %v1198
    %v1267 = vunpack.c.l.b16 %v1199
    %v1268 = vunpack.c.l.b16 %v1200
    %v1269 = vunpack.c.l.b16 %v1201
    %v1270 = vunpack.c.l.b16 %v1202
    %v1271 = vunpack.c.l.b16 %v1203
    %v1272 = vunpack.c.l.b16 %v1204
    %v1273 = vunpack.c.l.b16 %v1205
    %v1274 = vunpack.c.l.b16 %v1206
    %v1275 = vunpack.c.l.b16 %v1207
    %v1276 = vunpack.c.l.b16 %v1208
    %v1277 = vunpack.c.l.b16 %v1209
    %v1278 = vunpack.c.l.b16 %v1210
    %v1279 = vunpack.c.l.b16 %v1211
    %v1280 = vunpack.c.l.b16 %v1212
    %v1281 = vunpack.c.l.b16 %v1213
    %v1282 = vunpack.c.l.b16 %v1214
    %v1283 = vunpack.c.l.b16 %v1215
    %v1284 = vunpack.c.l.b16 %v1216
    %v1285 = vunpack.c.l.b16 %v1217
    %v1286 = vunpack.c.l.b16 %v1218
    %v1287 = vunpack.c.l.b16 %v1219
    %v1288 = vunpack.c.l.b16 %v1220
    %v1289 = vunpack.c.l.b16 %v1221
    %v1290 = vunpack.c.l.b16 %v1222
    %v1291 = vunpack.c.l.b16 %v1223
    %v1292 = vunpack.c.l.b16 %v1224
    %v1293 = vunpack.c.l.b16 %v1225
    %v1294 = vunpack.c.l.b16 %v1226
    %v1295 = vunpack.c.l.b16 %v1227
    %v1296 = vunpack.c.l.b16 %v1228
    %v1297 = vunpack.c.l.b16 %v1229
    %v1298 = vpack.c.b16 %v1267, %v1266
    %v1299 = vpack.c.b16 %v1269, %v1268
    %v1300 = vpack.c.b16 %v1271, %v1270
    %v1301 = vpack.c.b16 %v1273, %v1272
    %v1302 = vpack.c.b16 %v1275, %v1274
    %v1303 = vpack.c.b16 %v1277, %v1276
    %v1304 = vpack.c.b16 %v1279, %v1278
    %v1305 = vpack.c.b16 %v1281, %v1280
    %v1306 = vpack.c.b16 %v1283, %v1282
    %v1307 = vpack.c.b16 %v1285, %v1284
    %v1308 = vpack.c.b16 %v1287, %v1286
    %v1309 = vpack.c.b16 %v1289, %v1288
    %v1310 = vpack.c.b16 %v1291, %v1290
    %v1311 = vpack.c.b16 %v1293, %v1292
    %v1312 = vpack.c.b16 %v1295, %v1294
    %v1313 = vpack.c.b16 %v1297, %v1296
    %1330 = vmatpush.bf16.msra.mxu0 %v1305
    %1331 = vmatpush.bf16.msra.mxu0 %v1304
    %1332 = vmatpush.bf16.msra.mxu0 %v1303
    %1333 = vmatpush.bf16.msra.mxu0 %v1302
    %1334 = vmatpush.bf16.msra.mxu0 %v1301
    %1335 = vmatpush.bf16.msra.mxu0 %v1300
    %1336 = vmatpush.bf16.msra.mxu0 %v1299
    %1337 = vmatpush.bf16.msra.mxu0 %v1298
    %1338 = vmatmul.bf16.gmra.mxu0 %v1196
    %v1339 = vpop.f32.mrf.mxu0
    %v1340 = vadd.f32 %v1232, %v1339
    %v1341 = vpop.f32.mrf.mxu0
    %v1342 = vadd.f32 %v1232, %v1341
    %1343 = vdwg.mxu0
    %1344 = vmatpush.bf16.msra.mxu0 %v1313
    %1345 = vmatpush.bf16.msra.mxu0 %v1312
    %1346 = vmatpush.bf16.msra.mxu0 %v1311
    %1347 = vmatpush.bf16.msra.mxu0 %v1310
    %1348 = vmatpush.bf16.msra.mxu0 %v1309
    %1349 = vmatpush.bf16.msra.mxu0 %v1308
    %1350 = vmatpush.bf16.msra.mxu0 %v1307
    %1351 = vmatpush.bf16.msra.mxu0 %v1306
    %1352 = vmatmul.bf16.gmra.mxu0 %v1197
    %v1353 = vpop.f32.mrf.mxu0
    %v1354 = vadd.f32 %v1340, %v1353
    %v1355 = vpop.f32.mrf.mxu0
    %v1356 = vadd.f32 %v1342, %v1355
    %1357 = vdwg.mxu0
    %1358 = vst [vmem:[#allocation10] sm:$0xff] %v1354
    %1359 = vst [vmem:[#allocation10 + $0x8] sm:$0xff] %v1356
    // Predicated region
    $region34: #{tpu_custom_call.1} parent=1 // pred_check
      _
    $region35: #{tpu_custom_call.1} parent=1 // pred_check_branch
      %1361 = sbr.rel (0) target = $region37
    $region36: #{tpu_custom_call.1} parent=1 // pred_region
      %1363 = vsyncadd [#allocation6], 0
      %s1364 = sshll.u32 [#allocation10], 4
      %s1365 = int_to_ptr.vmem [resolvable:$true] %s1364
      %s1366 = sshll.u32 %s6, 4
      %s1367 = int_to_ptr.hbm [resolvable:$true] %s1366
      %1372 = dma.vmem_to_hbm [thread:$0]  %s1365, 256, %s1367, [#allocation6], 128, 128, 8
    $region37: #{tpu_custom_call.1} parent=1 // pred_fallthru
      _
    // Predicated region
    $region38: #{tpu_custom_call.1} parent=1 // pred_check
      _
    $region39: #{tpu_custom_call.1} parent=1 // pred_check_branch
      %1374 = sbr.rel (0) target = $region41
    $region40: #{tpu_custom_call.1} parent=1 // pred_region
      %1376 = dma.done [#allocation6], 256
    $region41: #{tpu_custom_call.1} parent=1 // pred_fallthru
      _
    %1377 = vsyncpa [#allocation5], 1
    %1378 = vsyncpa [#allocation8], 1
    %1379 = vsyncpa [#allocation6], 1

</llo_original>
